<compile_context>
chip_gen: v6e
topology: v6e:2x2x1
jax: 0.10.0
libtpu: 0.0.40
codegen_flags: <defaults>
</compile_context>

<pallas_src>
import functools
import math

import jax
import jax.numpy as jnp
from jax import lax
from jax.experimental import pallas as pl
from jax.experimental.pallas import tpu as pltpu

MATMUL_DTYPE = jnp.bfloat16   # MXU operand dtype (f32 accumulation); f32 for exact
SUBLANES = 8
LANES = 128


def _round_up(n, m):
    return ((n + m - 1) // m) * m


def _sigmoid_tanh(x):
    # sigmoid(x) = 0.5*tanh(0.5*x) + 0.5 : one EUP tanh + 2 VPU ops instead of
    # exp + reciprocal (2 EUP ops); EUP is a single VLIW slot on the critical chain.
    return 0.5 * jnp.tanh(0.5 * x) + 0.5


def _lstm_gates(gates, c, H, sigmoid_fn):
    """PyTorch gate order (i, f, g, o); f32 elementwise math."""
    i = sigmoid_fn(gates[:, 0 * H:1 * H])
    f = sigmoid_fn(gates[:, 1 * H:2 * H])
    g = jnp.tanh(gates[:, 2 * H:3 * H])
    o = sigmoid_fn(gates[:, 3 * H:4 * H])
    c_new = f * c + i * g
    h_new = o * jnp.tanh(c_new)
    return h_new, c_new


def _lstm2_kernel(x_ref, wih0_ref, b0_ref, wrec_ref, b1_ref, y_ref,
                  state_sc, r0_sc, xproj_sc):
    T, Bp, Din = x_ref.shape
    H4 = r0_sc.shape[-1]
    H = H4 // 4

    @pl.when(pl.program_id(0) == 0)
    def _():
        state_sc[...] = jnp.zeros_like(state_sc)   # [h0|c0|h1|c1] = 0
        r0_sc[...] = jnp.zeros_like(r0_sc)         # h0 @ W_hh0   = 0

    # Resident (constant-index) operands.
    w_ih0 = wih0_ref[...]                          # (Din, 4H) bf16
    w_rec = wrec_ref[...]                          # (2H, 8H)  bf16
    # Hoist bias broadcast out of the unrolled loop (JAX does not CSE it).
    b1b = jnp.broadcast_to(b1_ref[...], (Bp, H4))

    # Time-parallel layer-0 input projection for the whole block (one matmul),
    # staged in VMEM; the sequential loop only reads (Bp, 4H) slices of it.
    x2 = x_ref[...].reshape(T * Bp, Din)
    xproj_sc[...] = (jnp.dot(x2, w_ih0, preferred_element_type=jnp.float32)
                     + b0_ref[...]).reshape(T, Bp, H4)

    st = state_sc[...]
    h0 = st[:, 0 * H:1 * H]
    c0 = st[:, 1 * H:2 * H]
    h1 = st[:, 2 * H:3 * H]
    c1 = st[:, 3 * H:4 * H]
    r0 = r0_sc[...]            # carried h0 @ W_hh0 from previous step / block

    ys = []
    # Static unroll over the time block.  One fused MXU push per timestep:
    #   [h0(t), h1(t-1)] @ [[W_hh0, W_ih1], [0, W_hh1]]
    #   -> cols [0,4H)  = recurrent term for layer-0 at step t+1 (carried as r0)
    #   -> cols [4H,8H) = layer-1 gate pre-activation at step t
    for tt in range(T):
        g0 = xproj_sc[tt] + r0
        h0, c0 = _lstm_gates(g0, c0, H, _sigmoid_tanh)

        inp = jnp.concatenate([h0, h1], axis=-1).astype(w_rec.dtype)
        fused = jnp.dot(inp, w_rec, preferred_element_type=jnp.float32)  # (Bp, 8H)
        r0 = fused[:, :H4]
        g1 = fused[:, H4:] + b1b
        h1, c1 = _lstm_gates(g1, c1, H, _sigmoid_tanh)
        ys.append(h1)

    # Lane-dense writeback: one (Bp, T*H) tile (T*H % 128 == 0, wrapper ensures)
    # instead of T masked (Bp, H) partial stores.
    y_ref[...] = jnp.concatenate(ys, axis=-1).astype(y_ref.dtype)

    # Persist the carry for the next time block (single full-vreg tiles).
    state_sc[...] = jnp.concatenate([h0, c0, h1, c1], axis=-1)
    r0_sc[...] = r0


@functools.partial(jax.jit, static_argnames=("time_block",))
def lstm2_forward(x, wih0, whh0, b0, wih1, whh1, b1, *, time_block=16):
    S, B, Din = x.shape
    H = whh0.shape[0]
    H4 = 4 * H

    # Pad batch to a multiple of 8 sublanes.  Padded rows pick up the b0 bias and
    # compute (harmless) nonzero state: batch rows never mix in any matmul and pad
    # rows are sliced off below -- do NOT "fix" this with masking.
    Bp = _round_up(max(B, SUBLANES), SUBLANES)

    # Time block: pad S up to a multiple of T instead of shrinking T (no T=1 cliff
    # for awkward S).  T is rounded so the packed output block (Bp, T*H) is
    # lane-dense (T*H % 128 == 0); for H a multiple of 32/128 this changes nothing.
    T = max(1, min(time_block, S))
    q = LANES // math.gcd(H, LANES)
    T = _round_up(T, q)
    Sp = _round_up(S, T)

    xp = x.astype(MATMUL_DTYPE)                    # stream raw x in bf16
    if Bp != B or Sp != S:
        xp = jnp.pad(xp, ((0, Sp - S), (0, Bp - B), (0, 0)))

    # Layer-0 input-projection weight stays separate (time-parallel in-kernel);
    # the two per-step recurrent dots are fused into one (2H, 8H) RHS.
    wih0_c = wih0.astype(MATMUL_DTYPE)                              # (Din, 4H)
    w_rec = jnp.concatenate(
        [jnp.concatenate([whh0, wih1], axis=1),
         jnp.concatenate([jnp.zeros_like(whh1), whh1], axis=1)],
        axis=0).astype(MATMUL_DTYPE)                                # (2H, 8H)

    grid = (Sp // T,)
    grid_spec = pltpu.PrefetchScalarGridSpec(
        num_scalar_prefetch=0,
        grid=grid,
        in_specs=[
            pl.BlockSpec((T, Bp, Din), lambda s: (s, 0, 0)),   # raw x time block (bf16)
            pl.BlockSpec((Din, H4), lambda s: (0, 0)),         # W_ih0 (resident)
            pl.BlockSpec((1, H4), lambda s: (0, 0)),           # b0
            pl.BlockSpec((2 * H, 8 * H), lambda s: (0, 0)),    # [[W_hh0,W_ih1],[0,W_hh1]]
            pl.BlockSpec((1, H4), lambda s: (0, 0)),           # b1
        ],
        out_specs=pl.BlockSpec((Bp, T * H), lambda s: (0, s)), # lane-dense packed y
        scratch_shapes=[
            pltpu.VMEM((Bp, H4), jnp.float32),        # [h0|c0|h1|c1] carry
            pltpu.VMEM((Bp, H4), jnp.float32),        # carried h0 @ W_hh0
            pltpu.VMEM((T, Bp, H4), jnp.float32),     # block input projection
        ],
    )

    # Rough VMEM budget (double-buffered ins/outs + scratch); raise the scoped
    # limit only when needed (v5e default 16 MiB) with headroom under v7x's 64 MiB.
    est = (2 * T * Bp * Din * 2 + 2 * Din * H4 * 2 + 2 * 2 * H * 8 * H * 2
           + 2 * 2 * H4 * 4 + 2 * Bp * T * H * 4
           + 2 * Bp * H4 * 4 + T * Bp * H4 * 4)
    vmem_limit = None if est < 12 * (1 << 20) else min(2 * est, 60 * (1 << 20))

    y_packed = pl.pallas_call(
        _lstm2_kernel,
        out_shape=jax.ShapeDtypeStruct((Bp, Sp * H), jnp.float32),
        grid_spec=grid_spec,
        compiler_params=pltpu.CompilerParams(
            dimension_semantics=("arbitrary",),       # true recurrence over time blocks
            vmem_limit_bytes=vmem_limit),
    )(xp, wih0_c, b0, w_rec, b1)

    # (Bp, Sp*H) -> (Sp, Bp, H) -> (S, B, H): wrapper-side layout plumbing only.
    y = y_packed.reshape(Bp, Sp, H).transpose(1, 0, 2)
    return y[:S, :B, :]


def lstm2_reference(x, wih0, whh0, b0, wih1, whh1, b1):
    """Pure-JAX reference (lax.scan, unfused dots, standard sigmoid), same
    bf16-operand / f32-accumulation precision policy as the kernel."""
    S, B, Din = x.shape
    H = whh0.shape[0]
    xb = x.astype(MATMUL_DTYPE).reshape(S * B, Din)
    xproj = (jnp.dot(xb, wih0.astype(MATMUL_DTYPE),
                     preferred_element_type=jnp.float32) + b0).reshape(S, B, 4 * H)
    whh0_c = whh0.astype(MATMUL_DTYPE)
    w1_c = jnp.concatenate([wih1, whh1], axis=0).astype(MATMUL_DTYPE)

    def step(carry, xp_t):
        h0, c0, h1, c1 = carry
        g0 = xp_t + jnp.dot(h0.astype(MATMUL_DTYPE), whh0_c,
                            preferred_element_type=jnp.float32)
        h0, c0 = _lstm_gates(g0, c0, H, jax.nn.sigmoid)
        inp1 = jnp.concatenate([h0, h1], axis=-1).astype(MATMUL_DTYPE)
        g1 = jnp.dot(inp1, w1_c, preferred_element_type=jnp.float32) + b1
        h1, c1 = _lstm_gates(g1, c1, H, jax.nn.sigmoid)
        return (h0, c0, h1, c1), h1

    init = tuple(jnp.zeros((B, H), jnp.float32) for _ in range(4))
    _, ys = lax.scan(step, init, xproj)
    return ys


def init_params(key, in_dim, out_dim):
    """PyTorch nn.LSTM-style uniform(-1/sqrt(H), 1/sqrt(H)) init, deterministic."""
    H = out_dim
    k = 1.0 / jnp.sqrt(jnp.float32(H))
    keys = jax.random.split(key, 8)
    u = lambda kk, shape: jax.random.uniform(kk, shape, jnp.float32, -k, k)
    wih0 = u(keys[0], (in_dim, 4 * H))
    whh0 = u(keys[1], (H, 4 * H))
    b0 = u(keys[2], (1, 4 * H)) + u(keys[3], (1, 4 * H))     # b_ih + b_hh
    wih1 = u(keys[4], (H, 4 * H))
    whh1 = u(keys[5], (H, 4 * H))
    b1 = u(keys[6], (1, 4 * H)) + u(keys[7], (1, 4 * H))
    return wih0, whh0, b0, wih1, whh1, b1


if __name__ == "__main__":
    seq_len, batch, in_dim, out_dim = 8, 2, 16, 32

    key = jax.random.PRNGKey(0)
    kx, kp = jax.random.split(key)
    x = jax.random.normal(kx, (seq_len, batch, in_dim), jnp.float32)
    params = init_params(kp, in_dim, out_dim)

    # time_block=4 -> grid=(2,): exercises the cross-block h/c/r0 carry.
    # For long sequences use 16-32 to further amortize per-grid-step overhead.
    y = lstm2_forward(x, *params, time_block=4)
    y = jax.block_until_ready(y)

    y_ref = lstm2_reference(x, *params)
    assert y.shape == (seq_len, batch, out_dim)
    max_err = float(jnp.max(jnp.abs(y - y_ref)))
    assert max_err < 2e-3, f"mismatch vs JAX reference (max abs err {max_err})"

    print("KERNEL_OK")
</pallas_src>

<mosaic_0001>
module attributes {stable_mosaic.version = 11 : i64} {
  func.func @_lstm2_kernel(%arg0: i32, %arg1: memref<4x8x16xbf16, #tpu.memory_space<vmem>>, %arg2: memref<16x128xbf16, #tpu.memory_space<vmem>>, %arg3: memref<1x128xf32, #tpu.memory_space<vmem>>, %arg4: memref<64x256xbf16, #tpu.memory_space<vmem>>, %arg5: memref<1x128xf32, #tpu.memory_space<vmem>>, %arg6: memref<8x128xf32, #tpu.memory_space<vmem>>, %arg7: memref<8x128xf32, #tpu.memory_space<vmem>>, %arg8: memref<8x128xf32, #tpu.memory_space<vmem>>, %arg9: memref<4x8x128xf32, #tpu.memory_space<vmem>>) attributes {dimension_semantics = [#tpu.dimension_semantics<arbitrary>], iteration_bounds = array<i64: 2>, scalar_prefetch = 0 : i64, scratch_operands = 3 : i64, tpu.core_type = #tpu.core_type<tc>, window_params = [{transform_indices = @transform_0, window_bounds = array<i64: 4, 8, 16>}, {pipeline_mode = #tpu.pipeline_mode<synchronous>, transform_indices = @transform_1, window_bounds = array<i64: 16, 128>}, {pipeline_mode = #tpu.pipeline_mode<synchronous>, transform_indices = @transform_2, window_bounds = array<i64: 1, 128>}, {pipeline_mode = #tpu.pipeline_mode<synchronous>, transform_indices = @transform_3, window_bounds = array<i64: 64, 256>}, {pipeline_mode = #tpu.pipeline_mode<synchronous>, transform_indices = @transform_4, window_bounds = array<i64: 1, 128>}, {transform_indices = @transform_5, window_bounds = array<i64: 8, 128>}]} {
    %c0_i32 = arith.constant 0 : i32
    %0 = arith.cmpi eq, %arg0, %c0_i32 : i32
    %1 = arith.extui %0 : i1 to i32
    %c0_i32_0 = arith.constant 0 : i32
    %2 = arith.cmpi ne, %1, %c0_i32_0 : i32
    scf.if %2 {
      %cst_109 = arith.constant 0.000000e+00 : f32
      %310 = vector.broadcast %cst_109 : f32 to vector<8x128xf32>
      %c0_110 = arith.constant 0 : index
      %c0_111 = arith.constant 0 : index
      %311 = vector.load %arg7[%c0_110, %c0_111] : memref<8x128xf32, #tpu.memory_space<vmem>>, vector<8x128xf32>
      tpu.vector_store %arg7[%c0_110, %c0_111], %310 {strides = array<i32>} : memref<8x128xf32, #tpu.memory_space<vmem>>, vector<8x128xf32>,
      %cst_112 = arith.constant 0.000000e+00 : f32
      %312 = vector.broadcast %cst_112 : f32 to vector<8x128xf32>
      %c0_113 = arith.constant 0 : index
      %c0_114 = arith.constant 0 : index
      %313 = vector.load %arg8[%c0_113, %c0_114] : memref<8x128xf32, #tpu.memory_space<vmem>>, vector<8x128xf32>
      tpu.vector_store %arg8[%c0_113, %c0_114], %312 {strides = array<i32>} : memref<8x128xf32, #tpu.memory_space<vmem>>, vector<8x128xf32>,
    } else {
    }
    %c0 = arith.constant 0 : index
    %c0_1 = arith.constant 0 : index
    %3 = vector.load %arg2[%c0, %c0_1] : memref<16x128xbf16, #tpu.memory_space<vmem>>, vector<16x128xbf16>
    %c0_2 = arith.constant 0 : index
    %c0_3 = arith.constant 0 : index
    %4 = vector.load %arg4[%c0_2, %c0_3] : memref<64x256xbf16, #tpu.memory_space<vmem>>, vector<64x256xbf16>
    %c0_4 = arith.constant 0 : index
    %c0_5 = arith.constant 0 : index
    %5 = vector.load %arg5[%c0_4, %c0_5] : memref<1x128xf32, #tpu.memory_space<vmem>>, vector<1x128xf32>
    %6 = vector.shape_cast %5 : vector<1x128xf32> to vector<1x128xf32>
    %7 = vector.broadcast %6 : vector<1x128xf32> to vector<8x128xf32>
    %c0_6 = arith.constant 0 : index
    %c0_7 = arith.constant 0 : index
    %c0_8 = arith.constant 0 : index
    %8 = vector.load %arg1[%c0_6, %c0_7, %c0_8] : memref<4x8x16xbf16, #tpu.memory_space<vmem>>, vector<4x8x16xbf16>
    %9 = vector.shape_cast %8 : vector<4x8x16xbf16> to vector<32x16xbf16>
    %cst = arith.constant dense<0.000000e+00> : vector<32x128xf32>
    %10 = tpu.matmul %9, %3, %cst {dimension_numbers = #tpu.dot_dimension_numbers<[1], [0], [0], [1], [0, 0, 1, 1], [], []>} : vector<32x16xbf16>, vector<16x128xbf16>, vector<32x128xf32> -> vector<32x128xf32>
    %c0_9 = arith.constant 0 : index
    %c0_10 = arith.constant 0 : index
    %11 = vector.load %arg3[%c0_9, %c0_10] : memref<1x128xf32, #tpu.memory_space<vmem>>, vector<1x128xf32>
    %12 = vector.broadcast %11 : vector<1x128xf32> to vector<32x128xf32>
    %13 = arith.addf %10, %12 : vector<32x128xf32>
    %14 = vector.shape_cast %13 : vector<32x128xf32> to vector<4x8x128xf32>
    %c0_11 = arith.constant 0 : index
    %c0_12 = arith.constant 0 : index
    %c0_13 = arith.constant 0 : index
    %15 = vector.load %arg9[%c0_11, %c0_12, %c0_13] : memref<4x8x128xf32, #tpu.memory_space<vmem>>, vector<4x8x128xf32>
    tpu.vector_store %arg9[%c0_11, %c0_12, %c0_13], %14 {strides = array<i32>} : memref<4x8x128xf32, #tpu.memory_space<vmem>>, vector<4x8x128xf32>,
    %c0_14 = arith.constant 0 : index
    %c0_15 = arith.constant 0 : index
    %16 = vector.load %arg7[%c0_14, %c0_15] : memref<8x128xf32, #tpu.memory_space<vmem>>, vector<8x128xf32>
    %17 = vector.extract_strided_slice %16 {offsets = [0, 32], sizes = [8, 32], strides = [1, 1]} : vector<8x128xf32> to vector<8x32xf32>
    %18 = vector.extract_strided_slice %16 {offsets = [0, 64], sizes = [8, 32], strides = [1, 1]} : vector<8x128xf32> to vector<8x32xf32>
    %19 = vector.extract_strided_slice %16 {offsets = [0, 96], sizes = [8, 32], strides = [1, 1]} : vector<8x128xf32> to vector<8x32xf32>
    %c0_16 = arith.constant 0 : index
    %c0_17 = arith.constant 0 : index
    %20 = vector.load %arg8[%c0_16, %c0_17] : memref<8x128xf32, #tpu.memory_space<vmem>>, vector<8x128xf32>
    %c0_18 = arith.constant 0 : index
    %c0_19 = arith.constant 0 : index
    %c0_20 = arith.constant 0 : index
    %21 = vector.load %arg9[%c0_18, %c0_19, %c0_20] : memref<4x8x128xf32, #tpu.memory_space<vmem>>, vector<1x8x128xf32>
    %22 = vector.shape_cast %21 : vector<1x8x128xf32> to vector<8x128xf32>
    %23 = arith.addf %22, %20 : vector<8x128xf32>
    %24 = vector.extract_strided_slice %23 {offsets = [0, 0], sizes = [8, 32], strides = [1, 1]} : vector<8x128xf32> to vector<8x32xf32>
    %cst_21 = arith.constant 5.000000e-01 : f32
    %25 = vector.broadcast %cst_21 : f32 to vector<8x32xf32>
    %26 = arith.mulf %25, %24 : vector<8x32xf32>
    %27 = math.tanh %26 : vector<8x32xf32>
    %cst_22 = arith.constant 5.000000e-01 : f32
    %28 = vector.broadcast %cst_22 : f32 to vector<8x32xf32>
    %29 = arith.mulf %28, %27 : vector<8x32xf32>
    %cst_23 = arith.constant 5.000000e-01 : f32
    %30 = vector.broadcast %cst_23 : f32 to vector<8x32xf32>
    %31 = arith.addf %29, %30 : vector<8x32xf32>
    %32 = vector.extract_strided_slice %23 {offsets = [0, 32], sizes = [8, 32], strides = [1, 1]} : vector<8x128xf32> to vector<8x32xf32>
    %cst_24 = arith.constant 5.000000e-01 : f32
    %33 = vector.broadcast %cst_24 : f32 to vector<8x32xf32>
    %34 = arith.mulf %33, %32 : vector<8x32xf32>
    %35 = math.tanh %34 : vector<8x32xf32>
    %cst_25 = arith.constant 5.000000e-01 : f32
    %36 = vector.broadcast %cst_25 : f32 to vector<8x32xf32>
    %37 = arith.mulf %36, %35 : vector<8x32xf32>
    %cst_26 = arith.constant 5.000000e-01 : f32
    %38 = vector.broadcast %cst_26 : f32 to vector<8x32xf32>
    %39 = arith.addf %37, %38 : vector<8x32xf32>
    %40 = vector.extract_strided_slice %23 {offsets = [0, 64], sizes = [8, 32], strides = [1, 1]} : vector<8x128xf32> to vector<8x32xf32>
    %41 = math.tanh %40 : vector<8x32xf32>
    %42 = vector.extract_strided_slice %23 {offsets = [0, 96], sizes = [8, 32], strides = [1, 1]} : vector<8x128xf32> to vector<8x32xf32>
    %cst_27 = arith.constant 5.000000e-01 : f32
    %43 = vector.broadcast %cst_27 : f32 to vector<8x32xf32>
    %44 = arith.mulf %43, %42 : vector<8x32xf32>
    %45 = math.tanh %44 : vector<8x32xf32>
    %cst_28 = arith.constant 5.000000e-01 : f32
    %46 = vector.broadcast %cst_28 : f32 to vector<8x32xf32>
    %47 = arith.mulf %46, %45 : vector<8x32xf32>
    %cst_29 = arith.constant 5.000000e-01 : f32
    %48 = vector.broadcast %cst_29 : f32 to vector<8x32xf32>
    %49 = arith.addf %47, %48 : vector<8x32xf32>
    %50 = arith.mulf %39, %17 : vector<8x32xf32>
    %51 = arith.mulf %31, %41 : vector<8x32xf32>
    %52 = arith.addf %50, %51 : vector<8x32xf32>
    %53 = math.tanh %52 : vector<8x32xf32>
    %54 = arith.mulf %49, %53 : vector<8x32xf32>
    %55 = tpu.concatenate %54, %18 in 1 : vector<8x32xf32>, vector<8x32xf32> -> vector<8x64xf32>
    %56 = arith.truncf %55 : vector<8x64xf32> to vector<8x64xbf16>
    %cst_30 = arith.constant dense<0.000000e+00> : vector<8x256xf32>
    %57 = tpu.matmul %56, %4, %cst_30 {dimension_numbers = #tpu.dot_dimension_numbers<[1], [0], [0], [1], [0, 0, 1, 1], [], []>} : vector<8x64xbf16>, vector<64x256xbf16>, vector<8x256xf32> -> vector<8x256xf32>
    %58 = vector.extract_strided_slice %57 {offsets = [0, 0], sizes = [8, 128], strides = [1, 1]} : vector<8x256xf32> to vector<8x128xf32>
    %59 = vector.extract_strided_slice %57 {offsets = [0, 128], sizes = [8, 128], strides = [1, 1]} : vector<8x256xf32> to vector<8x128xf32>
    %60 = arith.addf %59, %7 : vector<8x128xf32>
    %61 = vector.extract_strided_slice %60 {offsets = [0, 0], sizes = [8, 32], strides = [1, 1]} : vector<8x128xf32> to vector<8x32xf32>
    %cst_31 = arith.constant 5.000000e-01 : f32
    %62 = vector.broadcast %cst_31 : f32 to vector<8x32xf32>
    %63 = arith.mulf %62, %61 : vector<8x32xf32>
    %64 = math.tanh %63 : vector<8x32xf32>
    %cst_32 = arith.constant 5.000000e-01 : f32
    %65 = vector.broadcast %cst_32 : f32 to vector<8x32xf32>
    %66 = arith.mulf %65, %64 : vector<8x32xf32>
    %cst_33 = arith.constant 5.000000e-01 : f32
    %67 = vector.broadcast %cst_33 : f32 to vector<8x32xf32>
    %68 = arith.addf %66, %67 : vector<8x32xf32>
    %69 = vector.extract_strided_slice %60 {offsets = [0, 32], sizes = [8, 32], strides = [1, 1]} : vector<8x128xf32> to vector<8x32xf32>
    %cst_34 = arith.constant 5.000000e-01 : f32
    %70 = vector.broadcast %cst_34 : f32 to vector<8x32xf32>
    %71 = arith.mulf %70, %69 : vector<8x32xf32>
    %72 = math.tanh %71 : vector<8x32xf32>
    %cst_35 = arith.constant 5.000000e-01 : f32
    %73 = vector.broadcast %cst_35 : f32 to vector<8x32xf32>
    %74 = arith.mulf %73, %72 : vector<8x32xf32>
    %cst_36 = arith.constant 5.000000e-01 : f32
    %75 = vector.broadcast %cst_36 : f32 to vector<8x32xf32>
    %76 = arith.addf %74, %75 : vector<8x32xf32>
    %77 = vector.extract_strided_slice %60 {offsets = [0, 64], sizes = [8, 32], strides = [1, 1]} : vector<8x128xf32> to vector<8x32xf32>
    %78 = math.tanh %77 : vector<8x32xf32>
    %79 = vector.extract_strided_slice %60 {offsets = [0, 96], sizes = [8, 32], strides = [1, 1]} : vector<8x128xf32> to vector<8x32xf32>
    %cst_37 = arith.constant 5.000000e-01 : f32
    %80 = vector.broadcast %cst_37 : f32 to vector<8x32xf32>
    %81 = arith.mulf %80, %79 : vector<8x32xf32>
    %82 = math.tanh %81 : vector<8x32xf32>
    %cst_38 = arith.constant 5.000000e-01 : f32
    %83 = vector.broadcast %cst_38 : f32 to vector<8x32xf32>
    %84 = arith.mulf %83, %82 : vector<8x32xf32>
    %cst_39 = arith.constant 5.000000e-01 : f32
    %85 = vector.broadcast %cst_39 : f32 to vector<8x32xf32>
    %86 = arith.addf %84, %85 : vector<8x32xf32>
    %87 = arith.mulf %76, %19 : vector<8x32xf32>
    %88 = arith.mulf %68, %78 : vector<8x32xf32>
    %89 = arith.addf %87, %88 : vector<8x32xf32>
    %90 = math.tanh %89 : vector<8x32xf32>
    %91 = arith.mulf %86, %90 : vector<8x32xf32>
    %c1 = arith.constant 1 : index
    %c0_40 = arith.constant 0 : index
    %c0_41 = arith.constant 0 : index
    %92 = vector.load %arg9[%c1, %c0_40, %c0_41] : memref<4x8x128xf32, #tpu.memory_space<vmem>>, vector<1x8x128xf32>
    %93 = vector.shape_cast %92 : vector<1x8x128xf32> to vector<8x128xf32>
    %94 = arith.addf %93, %58 : vector<8x128xf32>
    %95 = vector.extract_strided_slice %94 {offsets = [0, 0], sizes = [8, 32], strides = [1, 1]} : vector<8x128xf32> to vector<8x32xf32>
    %cst_42 = arith.constant 5.000000e-01 : f32
    %96 = vector.broadcast %cst_42 : f32 to vector<8x32xf32>
    %97 = arith.mulf %96, %95 : vector<8x32xf32>
    %98 = math.tanh %97 : vector<8x32xf32>
    %cst_43 = arith.constant 5.000000e-01 : f32
    %99 = vector.broadcast %cst_43 : f32 to vector<8x32xf32>
    %100 = arith.mulf %99, %98 : vector<8x32xf32>
    %cst_44 = arith.constant 5.000000e-01 : f32
    %101 = vector.broadcast %cst_44 : f32 to vector<8x32xf32>
    %102 = arith.addf %100, %101 : vector<8x32xf32>
    %103 = vector.extract_strided_slice %94 {offsets = [0, 32], sizes = [8, 32], strides = [1, 1]} : vector<8x128xf32> to vector<8x32xf32>
    %cst_45 = arith.constant 5.000000e-01 : f32
    %104 = vector.broadcast %cst_45 : f32 to vector<8x32xf32>
    %105 = arith.mulf %104, %103 : vector<8x32xf32>
    %106 = math.tanh %105 : vector<8x32xf32>
    %cst_46 = arith.constant 5.000000e-01 : f32
    %107 = vector.broadcast %cst_46 : f32 to vector<8x32xf32>
    %108 = arith.mulf %107, %106 : vector<8x32xf32>
    %cst_47 = arith.constant 5.000000e-01 : f32
    %109 = vector.broadcast %cst_47 : f32 to vector<8x32xf32>
    %110 = arith.addf %108, %109 : vector<8x32xf32>
    %111 = vector.extract_strided_slice %94 {offsets = [0, 64], sizes = [8, 32], strides = [1, 1]} : vector<8x128xf32> to vector<8x32xf32>
    %112 = math.tanh %111 : vector<8x32xf32>
    %113 = vector.extract_strided_slice %94 {offsets = [0, 96], sizes = [8, 32], strides = [1, 1]} : vector<8x128xf32> to vector<8x32xf32>
    %cst_48 = arith.constant 5.000000e-01 : f32
    %114 = vector.broadcast %cst_48 : f32 to vector<8x32xf32>
    %115 = arith.mulf %114, %113 : vector<8x32xf32>
    %116 = math.tanh %115 : vector<8x32xf32>
    %cst_49 = arith.constant 5.000000e-01 : f32
    %117 = vector.broadcast %cst_49 : f32 to vector<8x32xf32>
    %118 = arith.mulf %117, %116 : vector<8x32xf32>
    %cst_50 = arith.constant 5.000000e-01 : f32
    %119 = vector.broadcast %cst_50 : f32 to vector<8x32xf32>
    %120 = arith.addf %118, %119 : vector<8x32xf32>
    %121 = arith.mulf %110, %52 : vector<8x32xf32>
    %122 = arith.mulf %102, %112 : vector<8x32xf32>
    %123 = arith.addf %121, %122 : vector<8x32xf32>
    %124 = math.tanh %123 : vector<8x32xf32>
    %125 = arith.mulf %120, %124 : vector<8x32xf32>
    %126 = tpu.concatenate %125, %91 in 1 : vector<8x32xf32>, vector<8x32xf32> -> vector<8x64xf32>
    %127 = arith.truncf %126 : vector<8x64xf32> to vector<8x64xbf16>
    %cst_51 = arith.constant dense<0.000000e+00> : vector<8x256xf32>
    %128 = tpu.matmul %127, %4, %cst_51 {dimension_numbers = #tpu.dot_dimension_numbers<[1], [0], [0], [1], [0, 0, 1, 1], [], []>} : vector<8x64xbf16>, vector<64x256xbf16>, vector<8x256xf32> -> vector<8x256xf32>
    %129 = vector.extract_strided_slice %128 {offsets = [0, 0], sizes = [8, 128], strides = [1, 1]} : vector<8x256xf32> to vector<8x128xf32>
    %130 = vector.extract_strided_slice %128 {offsets = [0, 128], sizes = [8, 128], strides = [1, 1]} : vector<8x256xf32> to vector<8x128xf32>
    %131 = arith.addf %130, %7 : vector<8x128xf32>
    %132 = vector.extract_strided_slice %131 {offsets = [0, 0], sizes = [8, 32], strides = [1, 1]} : vector<8x128xf32> to vector<8x32xf32>
    %cst_52 = arith.constant 5.000000e-01 : f32
    %133 = vector.broadcast %cst_52 : f32 to vector<8x32xf32>
    %134 = arith.mulf %133, %132 : vector<8x32xf32>
    %135 = math.tanh %134 : vector<8x32xf32>
    %cst_53 = arith.constant 5.000000e-01 : f32
    %136 = vector.broadcast %cst_53 : f32 to vector<8x32xf32>
    %137 = arith.mulf %136, %135 : vector<8x32xf32>
    %cst_54 = arith.constant 5.000000e-01 : f32
    %138 = vector.broadcast %cst_54 : f32 to vector<8x32xf32>
    %139 = arith.addf %137, %138 : vector<8x32xf32>
    %140 = vector.extract_strided_slice %131 {offsets = [0, 32], sizes = [8, 32], strides = [1, 1]} : vector<8x128xf32> to vector<8x32xf32>
    %cst_55 = arith.constant 5.000000e-01 : f32
    %141 = vector.broadcast %cst_55 : f32 to vector<8x32xf32>
    %142 = arith.mulf %141, %140 : vector<8x32xf32>
    %143 = math.tanh %142 : vector<8x32xf32>
    %cst_56 = arith.constant 5.000000e-01 : f32
    %144 = vector.broadcast %cst_56 : f32 to vector<8x32xf32>
    %145 = arith.mulf %144, %143 : vector<8x32xf32>
    %cst_57 = arith.constant 5.000000e-01 : f32
    %146 = vector.broadcast %cst_57 : f32 to vector<8x32xf32>
    %147 = arith.addf %145, %146 : vector<8x32xf32>
    %148 = vector.extract_strided_slice %131 {offsets = [0, 64], sizes = [8, 32], strides = [1, 1]} : vector<8x128xf32> to vector<8x32xf32>
    %149 = math.tanh %148 : vector<8x32xf32>
    %150 = vector.extract_strided_slice %131 {offsets = [0, 96], sizes = [8, 32], strides = [1, 1]} : vector<8x128xf32> to vector<8x32xf32>
    %cst_58 = arith.constant 5.000000e-01 : f32
    %151 = vector.broadcast %cst_58 : f32 to vector<8x32xf32>
    %152 = arith.mulf %151, %150 : vector<8x32xf32>
    %153 = math.tanh %152 : vector<8x32xf32>
    %cst_59 = arith.constant 5.000000e-01 : f32
    %154 = vector.broadcast %cst_59 : f32 to vector<8x32xf32>
    %155 = arith.mulf %154, %153 : vector<8x32xf32>
    %cst_60 = arith.constant 5.000000e-01 : f32
    %156 = vector.broadcast %cst_60 : f32 to vector<8x32xf32>
    %157 = arith.addf %155, %156 : vector<8x32xf32>
    %158 = arith.mulf %147, %89 : vector<8x32xf32>
    %159 = arith.mulf %139, %149 : vector<8x32xf32>
    %160 = arith.addf %158, %159 : vector<8x32xf32>
    %161 = math.tanh %160 : vector<8x32xf32>
    %162 = arith.mulf %157, %161 : vector<8x32xf32>
    %c2 = arith.constant 2 : index
    %c0_61 = arith.constant 0 : index
    %c0_62 = arith.constant 0 : index
    %163 = vector.load %arg9[%c2, %c0_61, %c0_62] : memref<4x8x128xf32, #tpu.memory_space<vmem>>, vector<1x8x128xf32>
    %164 = vector.shape_cast %163 : vector<1x8x128xf32> to vector<8x128xf32>
    %165 = arith.addf %164, %129 : vector<8x128xf32>
    %166 = vector.extract_strided_slice %165 {offsets = [0, 0], sizes = [8, 32], strides = [1, 1]} : vector<8x128xf32> to vector<8x32xf32>
    %cst_63 = arith.constant 5.000000e-01 : f32
    %167 = vector.broadcast %cst_63 : f32 to vector<8x32xf32>
    %168 = arith.mulf %167, %166 : vector<8x32xf32>
    %169 = math.tanh %168 : vector<8x32xf32>
    %cst_64 = arith.constant 5.000000e-01 : f32
    %170 = vector.broadcast %cst_64 : f32 to vector<8x32xf32>
    %171 = arith.mulf %170, %169 : vector<8x32xf32>
    %cst_65 = arith.constant 5.000000e-01 : f32
    %172 = vector.broadcast %cst_65 : f32 to vector<8x32xf32>
    %173 = arith.addf %171, %172 : vector<8x32xf32>
    %174 = vector.extract_strided_slice %165 {offsets = [0, 32], sizes = [8, 32], strides = [1, 1]} : vector<8x128xf32> to vector<8x32xf32>
    %cst_66 = arith.constant 5.000000e-01 : f32
    %175 = vector.broadcast %cst_66 : f32 to vector<8x32xf32>
    %176 = arith.mulf %175, %174 : vector<8x32xf32>
    %177 = math.tanh %176 : vector<8x32xf32>
    %cst_67 = arith.constant 5.000000e-01 : f32
    %178 = vector.broadcast %cst_67 : f32 to vector<8x32xf32>
    %179 = arith.mulf %178, %177 : vector<8x32xf32>
    %cst_68 = arith.constant 5.000000e-01 : f32
    %180 = vector.broadcast %cst_68 : f32 to vector<8x32xf32>
    %181 = arith.addf %179, %180 : vector<8x32xf32>
    %182 = vector.extract_strided_slice %165 {offsets = [0, 64], sizes = [8, 32], strides = [1, 1]} : vector<8x128xf32> to vector<8x32xf32>
    %183 = math.tanh %182 : vector<8x32xf32>
    %184 = vector.extract_strided_slice %165 {offsets = [0, 96], sizes = [8, 32], strides = [1, 1]} : vector<8x128xf32> to vector<8x32xf32>
    %cst_69 = arith.constant 5.000000e-01 : f32
    %185 = vector.broadcast %cst_69 : f32 to vector<8x32xf32>
    %186 = arith.mulf %185, %184 : vector<8x32xf32>
    %187 = math.tanh %186 : vector<8x32xf32>
    %cst_70 = arith.constant 5.000000e-01 : f32
    %188 = vector.broadcast %cst_70 : f32 to vector<8x32xf32>
    %189 = arith.mulf %188, %187 : vector<8x32xf32>
    %cst_71 = arith.constant 5.000000e-01 : f32
    %190 = vector.broadcast %cst_71 : f32 to vector<8x32xf32>
    %191 = arith.addf %189, %190 : vector<8x32xf32>
    %192 = arith.mulf %181, %123 : vector<8x32xf32>
    %193 = arith.mulf %173, %183 : vector<8x32xf32>
    %194 = arith.addf %192, %193 : vector<8x32xf32>
    %195 = math.tanh %194 : vector<8x32xf32>
    %196 = arith.mulf %191, %195 : vector<8x32xf32>
    %197 = tpu.concatenate %196, %162 in 1 : vector<8x32xf32>, vector<8x32xf32> -> vector<8x64xf32>
    %198 = arith.truncf %197 : vector<8x64xf32> to vector<8x64xbf16>
    %cst_72 = arith.constant dense<0.000000e+00> : vector<8x256xf32>
    %199 = tpu.matmul %198, %4, %cst_72 {dimension_numbers = #tpu.dot_dimension_numbers<[1], [0], [0], [1], [0, 0, 1, 1], [], []>} : vector<8x64xbf16>, vector<64x256xbf16>, vector<8x256xf32> -> vector<8x256xf32>
    %200 = vector.extract_strided_slice %199 {offsets = [0, 0], sizes = [8, 128], strides = [1, 1]} : vector<8x256xf32> to vector<8x128xf32>
    %201 = vector.extract_strided_slice %199 {offsets = [0, 128], sizes = [8, 128], strides = [1, 1]} : vector<8x256xf32> to vector<8x128xf32>
    %202 = arith.addf %201, %7 : vector<8x128xf32>
    %203 = vector.extract_strided_slice %202 {offsets = [0, 0], sizes = [8, 32], strides = [1, 1]} : vector<8x128xf32> to vector<8x32xf32>
    %cst_73 = arith.constant 5.000000e-01 : f32
    %204 = vector.broadcast %cst_73 : f32 to vector<8x32xf32>
    %205 = arith.mulf %204, %203 : vector<8x32xf32>
    %206 = math.tanh %205 : vector<8x32xf32>
    %cst_74 = arith.constant 5.000000e-01 : f32
    %207 = vector.broadcast %cst_74 : f32 to vector<8x32xf32>
    %208 = arith.mulf %207, %206 : vector<8x32xf32>
    %cst_75 = arith.constant 5.000000e-01 : f32
    %209 = vector.broadcast %cst_75 : f32 to vector<8x32xf32>
    %210 = arith.addf %208, %209 : vector<8x32xf32>
    %211 = vector.extract_strided_slice %202 {offsets = [0, 32], sizes = [8, 32], strides = [1, 1]} : vector<8x128xf32> to vector<8x32xf32>
    %cst_76 = arith.constant 5.000000e-01 : f32
    %212 = vector.broadcast %cst_76 : f32 to vector<8x32xf32>
    %213 = arith.mulf %212, %211 : vector<8x32xf32>
    %214 = math.tanh %213 : vector<8x32xf32>
    %cst_77 = arith.constant 5.000000e-01 : f32
    %215 = vector.broadcast %cst_77 : f32 to vector<8x32xf32>
    %216 = arith.mulf %215, %214 : vector<8x32xf32>
    %cst_78 = arith.constant 5.000000e-01 : f32
    %217 = vector.broadcast %cst_78 : f32 to vector<8x32xf32>
    %218 = arith.addf %216, %217 : vector<8x32xf32>
    %219 = vector.extract_strided_slice %202 {offsets = [0, 64], sizes = [8, 32], strides = [1, 1]} : vector<8x128xf32> to vector<8x32xf32>
    %220 = math.tanh %219 : vector<8x32xf32>
    %221 = vector.extract_strided_slice %202 {offsets = [0, 96], sizes = [8, 32], strides = [1, 1]} : vector<8x128xf32> to vector<8x32xf32>
    %cst_79 = arith.constant 5.000000e-01 : f32
    %222 = vector.broadcast %cst_79 : f32 to vector<8x32xf32>
    %223 = arith.mulf %222, %221 : vector<8x32xf32>
    %224 = math.tanh %223 : vector<8x32xf32>
    %cst_80 = arith.constant 5.000000e-01 : f32
    %225 = vector.broadcast %cst_80 : f32 to vector<8x32xf32>
    %226 = arith.mulf %225, %224 : vector<8x32xf32>
    %cst_81 = arith.constant 5.000000e-01 : f32
    %227 = vector.broadcast %cst_81 : f32 to vector<8x32xf32>
    %228 = arith.addf %226, %227 : vector<8x32xf32>
    %229 = arith.mulf %218, %160 : vector<8x32xf32>
    %230 = arith.mulf %210, %220 : vector<8x32xf32>
    %231 = arith.addf %229, %230 : vector<8x32xf32>
    %232 = math.tanh %231 : vector<8x32xf32>
    %233 = arith.mulf %228, %232 : vector<8x32xf32>
    %c3 = arith.constant 3 : index
    %c0_82 = arith.constant 0 : index
    %c0_83 = arith.constant 0 : index
    %234 = vector.load %arg9[%c3, %c0_82, %c0_83] : memref<4x8x128xf32, #tpu.memory_space<vmem>>, vector<1x8x128xf32>
    %235 = vector.shape_cast %234 : vector<1x8x128xf32> to vector<8x128xf32>
    %236 = arith.addf %235, %200 : vector<8x128xf32>
    %237 = vector.extract_strided_slice %236 {offsets = [0, 0], sizes = [8, 32], strides = [1, 1]} : vector<8x128xf32> to vector<8x32xf32>
    %cst_84 = arith.constant 5.000000e-01 : f32
    %238 = vector.broadcast %cst_84 : f32 to vector<8x32xf32>
    %239 = arith.mulf %238, %237 : vector<8x32xf32>
    %240 = math.tanh %239 : vector<8x32xf32>
    %cst_85 = arith.constant 5.000000e-01 : f32
    %241 = vector.broadcast %cst_85 : f32 to vector<8x32xf32>
    %242 = arith.mulf %241, %240 : vector<8x32xf32>
    %cst_86 = arith.constant 5.000000e-01 : f32
    %243 = vector.broadcast %cst_86 : f32 to vector<8x32xf32>
    %244 = arith.addf %242, %243 : vector<8x32xf32>
    %245 = vector.extract_strided_slice %236 {offsets = [0, 32], sizes = [8, 32], strides = [1, 1]} : vector<8x128xf32> to vector<8x32xf32>
    %cst_87 = arith.constant 5.000000e-01 : f32
    %246 = vector.broadcast %cst_87 : f32 to vector<8x32xf32>
    %247 = arith.mulf %246, %245 : vector<8x32xf32>
    %248 = math.tanh %247 : vector<8x32xf32>
    %cst_88 = arith.constant 5.000000e-01 : f32
    %249 = vector.broadcast %cst_88 : f32 to vector<8x32xf32>
    %250 = arith.mulf %249, %248 : vector<8x32xf32>
    %cst_89 = arith.constant 5.000000e-01 : f32
    %251 = vector.broadcast %cst_89 : f32 to vector<8x32xf32>
    %252 = arith.addf %250, %251 : vector<8x32xf32>
    %253 = vector.extract_strided_slice %236 {offsets = [0, 64], sizes = [8, 32], strides = [1, 1]} : vector<8x128xf32> to vector<8x32xf32>
    %254 = math.tanh %253 : vector<8x32xf32>
    %255 = vector.extract_strided_slice %236 {offsets = [0, 96], sizes = [8, 32], strides = [1, 1]} : vector<8x128xf32> to vector<8x32xf32>
    %cst_90 = arith.constant 5.000000e-01 : f32
    %256 = vector.broadcast %cst_90 : f32 to vector<8x32xf32>
    %257 = arith.mulf %256, %255 : vector<8x32xf32>
    %258 = math.tanh %257 : vector<8x32xf32>
    %cst_91 = arith.constant 5.000000e-01 : f32
    %259 = vector.broadcast %cst_91 : f32 to vector<8x32xf32>
    %260 = arith.mulf %259, %258 : vector<8x32xf32>
    %cst_92 = arith.constant 5.000000e-01 : f32
    %261 = vector.broadcast %cst_92 : f32 to vector<8x32xf32>
    %262 = arith.addf %260, %261 : vector<8x32xf32>
    %263 = arith.mulf %252, %194 : vector<8x32xf32>
    %264 = arith.mulf %244, %254 : vector<8x32xf32>
    %265 = arith.addf %263, %264 : vector<8x32xf32>
    %266 = math.tanh %265 : vector<8x32xf32>
    %267 = arith.mulf %262, %266 : vector<8x32xf32>
    %268 = tpu.concatenate %267, %233 in 1 : vector<8x32xf32>, vector<8x32xf32> -> vector<8x64xf32>
    %269 = arith.truncf %268 : vector<8x64xf32> to vector<8x64xbf16>
    %cst_93 = arith.constant dense<0.000000e+00> : vector<8x256xf32>
    %270 = tpu.matmul %269, %4, %cst_93 {dimension_numbers = #tpu.dot_dimension_numbers<[1], [0], [0], [1], [0, 0, 1, 1], [], []>} : vector<8x64xbf16>, vector<64x256xbf16>, vector<8x256xf32> -> vector<8x256xf32>
    %271 = vector.extract_strided_slice %270 {offsets = [0, 0], sizes = [8, 128], strides = [1, 1]} : vector<8x256xf32> to vector<8x128xf32>
    %272 = vector.extract_strided_slice %270 {offsets = [0, 128], sizes = [8, 128], strides = [1, 1]} : vector<8x256xf32> to vector<8x128xf32>
    %273 = arith.addf %272, %7 : vector<8x128xf32>
    %274 = vector.extract_strided_slice %273 {offsets = [0, 0], sizes = [8, 32], strides = [1, 1]} : vector<8x128xf32> to vector<8x32xf32>
    %cst_94 = arith.constant 5.000000e-01 : f32
    %275 = vector.broadcast %cst_94 : f32 to vector<8x32xf32>
    %276 = arith.mulf %275, %274 : vector<8x32xf32>
    %277 = math.tanh %276 : vector<8x32xf32>
    %cst_95 = arith.constant 5.000000e-01 : f32
    %278 = vector.broadcast %cst_95 : f32 to vector<8x32xf32>
    %279 = arith.mulf %278, %277 : vector<8x32xf32>
    %cst_96 = arith.constant 5.000000e-01 : f32
    %280 = vector.broadcast %cst_96 : f32 to vector<8x32xf32>
    %281 = arith.addf %279, %280 : vector<8x32xf32>
    %282 = vector.extract_strided_slice %273 {offsets = [0, 32], sizes = [8, 32], strides = [1, 1]} : vector<8x128xf32> to vector<8x32xf32>
    %cst_97 = arith.constant 5.000000e-01 : f32
    %283 = vector.broadcast %cst_97 : f32 to vector<8x32xf32>
    %284 = arith.mulf %283, %282 : vector<8x32xf32>
    %285 = math.tanh %284 : vector<8x32xf32>
    %cst_98 = arith.constant 5.000000e-01 : f32
    %286 = vector.broadcast %cst_98 : f32 to vector<8x32xf32>
    %287 = arith.mulf %286, %285 : vector<8x32xf32>
    %cst_99 = arith.constant 5.000000e-01 : f32
    %288 = vector.broadcast %cst_99 : f32 to vector<8x32xf32>
    %289 = arith.addf %287, %288 : vector<8x32xf32>
    %290 = vector.extract_strided_slice %273 {offsets = [0, 64], sizes = [8, 32], strides = [1, 1]} : vector<8x128xf32> to vector<8x32xf32>
    %291 = math.tanh %290 : vector<8x32xf32>
    %292 = vector.extract_strided_slice %273 {offsets = [0, 96], sizes = [8, 32], strides = [1, 1]} : vector<8x128xf32> to vector<8x32xf32>
    %cst_100 = arith.constant 5.000000e-01 : f32
    %293 = vector.broadcast %cst_100 : f32 to vector<8x32xf32>
    %294 = arith.mulf %293, %292 : vector<8x32xf32>
    %295 = math.tanh %294 : vector<8x32xf32>
    %cst_101 = arith.constant 5.000000e-01 : f32
    %296 = vector.broadcast %cst_101 : f32 to vector<8x32xf32>
    %297 = arith.mulf %296, %295 : vector<8x32xf32>
    %cst_102 = arith.constant 5.000000e-01 : f32
    %298 = vector.broadcast %cst_102 : f32 to vector<8x32xf32>
    %299 = arith.addf %297, %298 : vector<8x32xf32>
    %300 = arith.mulf %289, %231 : vector<8x32xf32>
    %301 = arith.mulf %281, %291 : vector<8x32xf32>
    %302 = arith.addf %300, %301 : vector<8x32xf32>
    %303 = math.tanh %302 : vector<8x32xf32>
    %304 = arith.mulf %299, %303 : vector<8x32xf32>
    %305 = tpu.concatenate %91, %162, %233, %304 in 1 : vector<8x32xf32>, vector<8x32xf32>, vector<8x32xf32>, vector<8x32xf32> -> vector<8x128xf32>
    %c0_103 = arith.constant 0 : index
    %c0_104 = arith.constant 0 : index
    %306 = vector.load %arg6[%c0_103, %c0_104] : memref<8x128xf32, #tpu.memory_space<vmem>>, vector<8x128xf32>
    tpu.vector_store %arg6[%c0_103, %c0_104], %305 {strides = array<i32>} : memref<8x128xf32, #tpu.memory_space<vmem>>, vector<8x128xf32>,
    %307 = tpu.concatenate %267, %265, %304, %302 in 1 : vector<8x32xf32>, vector<8x32xf32>, vector<8x32xf32>, vector<8x32xf32> -> vector<8x128xf32>
    %c0_105 = arith.constant 0 : index
    %c0_106 = arith.constant 0 : index
    %308 = vector.load %arg7[%c0_105, %c0_106] : memref<8x128xf32, #tpu.memory_space<vmem>>, vector<8x128xf32>
    tpu.vector_store %arg7[%c0_105, %c0_106], %307 {strides = array<i32>} : memref<8x128xf32, #tpu.memory_space<vmem>>, vector<8x128xf32>,
    %c0_107 = arith.constant 0 : index
    %c0_108 = arith.constant 0 : index
    %309 = vector.load %arg8[%c0_107, %c0_108] : memref<8x128xf32, #tpu.memory_space<vmem>>, vector<8x128xf32>
    tpu.vector_store %arg8[%c0_107, %c0_108], %271 {strides = array<i32>} : memref<8x128xf32, #tpu.memory_space<vmem>>, vector<8x128xf32>,
    return
  }
  func.func @transform_0(%arg0: i32) -> (i32, i32, i32) {
    %c0_i32 = arith.constant 0 : i32
    %c0_i32_0 = arith.constant 0 : i32
    %c0_i32_1 = arith.constant 0 : i32
    return %arg0, %c0_i32, %c0_i32_0 : i32, i32, i32
  }
  func.func @transform_1(%arg0: i32) -> (i32, i32) {
    %c0_i32 = arith.constant 0 : i32
    %c0_i32_0 = arith.constant 0 : i32
    %c0_i32_1 = arith.constant 0 : i32
    return %c0_i32, %c0_i32_0 : i32, i32
  }
  func.func @transform_2(%arg0: i32) -> (i32, i32) {
    %c0_i32 = arith.constant 0 : i32
    %c0_i32_0 = arith.constant 0 : i32
    %c0_i32_1 = arith.constant 0 : i32
    return %c0_i32, %c0_i32_0 : i32, i32
  }
  func.func @transform_3(%arg0: i32) -> (i32, i32) {
    %c0_i32 = arith.constant 0 : i32
    %c0_i32_0 = arith.constant 0 : i32
    %c0_i32_1 = arith.constant 0 : i32
    return %c0_i32, %c0_i32_0 : i32, i32
  }
  func.func @transform_4(%arg0: i32) -> (i32, i32) {
    %c0_i32 = arith.constant 0 : i32
    %c0_i32_0 = arith.constant 0 : i32
    %c0_i32_1 = arith.constant 0 : i32
    return %c0_i32, %c0_i32_0 : i32, i32
  }
  func.func @transform_5(%arg0: i32) -> (i32, i32) {
    %c0_i32 = arith.constant 0 : i32
    %c0_i32_0 = arith.constant 0 : i32
    return %c0_i32, %arg0 : i32, i32
  }
}

</mosaic_0001>

<llo_original>
// kernel: lstm2_forward.1
$region0: #{lstm2_forward.1}
  #allocation0 [shape = 'u32[]', space=smem, size = 0x4, offset = 0x4, fixed_abs, tag = 'smem constant byte address 0x4 - core index']
  #allocation1 [shape = 'u32[144,128]{1,0:T(1,128)}', space=vmem, size = 0x12000, scoped, tag = 'internal scratch']
  #allocation2 [shape = 'f32[8,128]{1,0:T(8,128)}', space=vmem, size = 0x1000, scoped, tag = 'scratch operand']
  #allocation3 [shape = 'f32[8,128]{1,0:T(8,128)}', space=vmem, size = 0x1000, scoped, tag = 'scratch operand']
  #allocation4 [shape = 'f32[4,8,128]{2,1,0:T(8,128)}', space=vmem, size = 0x4000, scoped, tag = 'scratch operand']
  %s0 = inlined_call_operand.vmem [shape: bf16[8,8,16], index: 0, kind: input, shape index: {}]
  %s1 = inlined_call_operand.vmem [shape: bf16[16,128], index: 1, kind: input, shape index: {}]
  %s2 = inlined_call_operand.vmem [shape: f32[1,128], index: 2, kind: input, shape index: {}]
  %s3 = inlined_call_operand.vmem [shape: bf16[64,256], index: 3, kind: input, shape index: {}]
  %s4 = inlined_call_operand.vmem [shape: f32[1,128], index: 4, kind: input, shape index: {}]
  %s5 = inlined_call_operand.vmem [shape: f32[8,256], index: 5, kind: output, shape index: {}]
  %s6 = sld [smem:[#allocation0]]
  $region57: #{lstm2_forward.1} parent=0
    _
  %s8 = ssub.s32 1, %s6
  %s9 = scalar_select 0, %s8, %s6
  loop: start=0, step=1, limit=4
  $region2: #{lstm2_forward.1} parent=0 // loop_pre_header
    _
  $region3: #{lstm2_forward.1} parent=0 // loop_header
    %s11 = sphi 0, %s15
    %p12 = scmp.ge.s32.totalorder %s11, 4
    %s21 = sphi 0, %s23
    %s24 = sphi 0, %s21
    %s25 = sphi 0, %s24
    %s41 = sphi 0, %s25
    %s45 = sphi 0, %s45
    %s47 = sphi 0, %s45
    %s48 = sphi 0, %s47
    %s62 = sphi 0, %s48
    %s66 = sphi 0, %s66
    %s68 = sphi 0, %s66
    %s69 = sphi 0, %s68
    %s83 = sphi 0, %s69
    %s87 = sphi 0, %s87
    %s89 = sphi 0, %s87
    %s90 = sphi 0, %s89
    %s104 = sphi 0, %s90
    %s108 = sphi 0, %s108
    %s110 = sphi 0, %s108
    %s111 = sphi 0, %s110
    %s125 = sphi 0, %s111
    %s131 = sphi 0, %s133
    %s134 = sphi 0, %s131
    %s135 = sphi 0, %s134
    %s151 = sphi 0, %s135
  $region4: #{lstm2_forward.1} parent=0 // loop_header_branch
    %14 = sbr.rel (%p12) target = $region8
  $region5: #{lstm2_forward.1} parent=0 // loop_body
    %s16 = ssub.s32 %s11, 1
    %s17 = ssub.s32 %s11, 2
    %s18 = sadd.s32 %s11, 1
    %s19 = ssub.s32 %s11, %s18
    %p20 = scmp.eq.s32.totalorder %s19, 0
    %s22 = sadd.s32 %s21, 1
    %s23 = scalar_select %p20, %s21, %s22
    %p26 = pneg %p20
    %p27 = scmp.eq.s32.totalorder %s11, 1
    %p28 = por %p26, %p27
    %p29 = scmp.ne.s32.totalorder %s21, %s24
    %p30 = scmp.eq.s32.totalorder %s11, 0
    %p31 = por %p29, %p30
    %p32 = scmp.ne.s32.totalorder %s21, %s24
    %p33 = scmp.eq.s32.totalorder %s16, 1
    %p34 = por %p32, %p33
    %p35 = scmp.ne.s32.totalorder %s24, %s25
    %p36 = scmp.eq.s32.totalorder %s16, 0
    %p37 = por %p35, %p36
    %p38 = scmp.ne.s32.totalorder %s24, %s25
    %p39 = scmp.eq.s32.totalorder %s17, 1
    %p40 = por %p38, %p39
    %p42 = scmp.ne.s32.totalorder %s25, %s41
    %p43 = scmp.eq.s32.totalorder %s17, 0
    %p44 = por %p42, %p43
    %s46 = sadd.s32 %s45, 1
    %p49 = scmp.eq.s32.totalorder %s11, 1
    %p50 = scmp.ne.s32.totalorder %s45, %s47
    %p51 = scmp.eq.s32.totalorder %s11, 0
    %p52 = por %p50, %p51
    %p53 = scmp.ne.s32.totalorder %s45, %s47
    %p54 = scmp.eq.s32.totalorder %s16, 1
    %p55 = por %p53, %p54
    %p56 = scmp.ne.s32.totalorder %s47, %s48
    %p57 = scmp.eq.s32.totalorder %s16, 0
    %p58 = por %p56, %p57
    %p59 = scmp.ne.s32.totalorder %s47, %s48
    %p60 = scmp.eq.s32.totalorder %s17, 1
    %p61 = por %p59, %p60
    %p63 = scmp.ne.s32.totalorder %s48, %s62
    %p64 = scmp.eq.s32.totalorder %s17, 0
    %p65 = por %p63, %p64
    %s67 = sadd.s32 %s66, 1
    %p70 = scmp.eq.s32.totalorder %s11, 1
    %p71 = scmp.ne.s32.totalorder %s66, %s68
    %p72 = scmp.eq.s32.totalorder %s11, 0
    %p73 = por %p71, %p72
    %p74 = scmp.ne.s32.totalorder %s66, %s68
    %p75 = scmp.eq.s32.totalorder %s16, 1
    %p76 = por %p74, %p75
    %p77 = scmp.ne.s32.totalorder %s68, %s69
    %p78 = scmp.eq.s32.totalorder %s16, 0
    %p79 = por %p77, %p78
    %p80 = scmp.ne.s32.totalorder %s68, %s69
    %p81 = scmp.eq.s32.totalorder %s17, 1
    %p82 = por %p80, %p81
    %p84 = scmp.ne.s32.totalorder %s69, %s83
    %p85 = scmp.eq.s32.totalorder %s17, 0
    %p86 = por %p84, %p85
    %s88 = sadd.s32 %s87, 1
    %p91 = scmp.eq.s32.totalorder %s11, 1
    %p92 = scmp.ne.s32.totalorder %s87, %s89
    %p93 = scmp.eq.s32.totalorder %s11, 0
    %p94 = por %p92, %p93
    %p95 = scmp.ne.s32.totalorder %s87, %s89
    %p96 = scmp.eq.s32.totalorder %s16, 1
    %p97 = por %p95, %p96
    %p98 = scmp.ne.s32.totalorder %s89, %s90
    %p99 = scmp.eq.s32.totalorder %s16, 0
    %p100 = por %p98, %p99
    %p101 = scmp.ne.s32.totalorder %s89, %s90
    %p102 = scmp.eq.s32.totalorder %s17, 1
    %p103 = por %p101, %p102
    %p105 = scmp.ne.s32.totalorder %s90, %s104
    %p106 = scmp.eq.s32.totalorder %s17, 0
    %p107 = por %p105, %p106
    %s109 = sadd.s32 %s108, 1
    %p112 = scmp.eq.s32.totalorder %s11, 1
    %p113 = scmp.ne.s32.totalorder %s108, %s110
    %p114 = scmp.eq.s32.totalorder %s11, 0
    %p115 = por %p113, %p114
    %p116 = scmp.ne.s32.totalorder %s108, %s110
    %p117 = scmp.eq.s32.totalorder %s16, 1
    %p118 = por %p116, %p117
    %p119 = scmp.ne.s32.totalorder %s110, %s111
    %p120 = scmp.eq.s32.totalorder %s16, 0
    %p121 = por %p119, %p120
    %p122 = scmp.ne.s32.totalorder %s110, %s111
    %p123 = scmp.eq.s32.totalorder %s17, 1
    %p124 = por %p122, %p123
    %p126 = scmp.ne.s32.totalorder %s111, %s125
    %p127 = scmp.eq.s32.totalorder %s17, 0
    %p128 = por %p126, %p127
    %s129 = ssub.s32 %s11, %s18
    %p130 = scmp.eq.s32.totalorder %s129, 0
    %s132 = sadd.s32 %s131, 1
    %s133 = scalar_select %p130, %s131, %s132
    %p136 = pneg %p130
    %p137 = scmp.eq.s32.totalorder %s11, 1
    %p138 = por %p136, %p137
    %p139 = scmp.ne.s32.totalorder %s131, %s134
    %p140 = scmp.eq.s32.totalorder %s11, 0
    %p141 = por %p139, %p140
    %p142 = scmp.ne.s32.totalorder %s131, %s134
    %p143 = scmp.eq.s32.totalorder %s16, 1
    %p144 = por %p142, %p143
    %p145 = scmp.ne.s32.totalorder %s134, %s135
    %p146 = scmp.eq.s32.totalorder %s16, 0
    %p147 = por %p145, %p146
    %p148 = scmp.ne.s32.totalorder %s134, %s135
    %p149 = scmp.eq.s32.totalorder %s17, 1
    %p150 = por %p148, %p149
    %p152 = scmp.ne.s32.totalorder %s135, %s151
    %p153 = scmp.eq.s32.totalorder %s17, 0
    %p154 = por %p152, %p153
    %p155 = scmp.le.s32.totalorder 1, %s11
    %p156 = scmp.lt.s32.totalorder %s11, 3
    %p157 = pnand %p155, %p156
    %p158 = pneg %p157
    // Predicated region
    $region9: #{lstm2_forward.1} parent=5 // pred_check
      _
    $region10: #{lstm2_forward.1} parent=5 // pred_check_branch
      %160 = sbr.rel (%p157) target = $region12
    $region11: #{lstm2_forward.1} parent=5 // pred_region
      %s161 = ssub.s32 %s11, 1
      // Predicated region
      $region13: #{lstm2_forward.1} parent=11 // pred_check
        %p162 = pneg %p58
      $region14: #{lstm2_forward.1} parent=11 // pred_check_branch
        %164 = sbr.rel (%p162) target = $region16
      $region15: #{lstm2_forward.1} parent=11 // pred_region
        _
      $region16: #{lstm2_forward.1} parent=11 // pred_fallthru
        _
      // Predicated region
      $region17: #{lstm2_forward.1} parent=11 // pred_check
        %p165 = pneg %p79
      $region18: #{lstm2_forward.1} parent=11 // pred_check_branch
        %167 = sbr.rel (%p165) target = $region20
      $region19: #{lstm2_forward.1} parent=11 // pred_region
        _
      $region20: #{lstm2_forward.1} parent=11 // pred_fallthru
        _
      // Predicated region
      $region21: #{lstm2_forward.1} parent=11 // pred_check
        %p168 = pneg %p100
      $region22: #{lstm2_forward.1} parent=11 // pred_check_branch
        %170 = sbr.rel (%p168) target = $region24
      $region23: #{lstm2_forward.1} parent=11 // pred_region
        _
      $region24: #{lstm2_forward.1} parent=11 // pred_fallthru
        _
      // Predicated region
      $region25: #{lstm2_forward.1} parent=11 // pred_check
        %p171 = pneg %p121
      $region26: #{lstm2_forward.1} parent=11 // pred_check_branch
        %173 = sbr.rel (%p171) target = $region28
      $region27: #{lstm2_forward.1} parent=11 // pred_region
        _
      $region28: #{lstm2_forward.1} parent=11 // pred_fallthru
        _
    $region12: #{lstm2_forward.1} parent=5 // pred_fallthru
      _
    %p174 = scmp.lt.s32.totalorder %s11, 2
    // Predicated region
    $region29: #{lstm2_forward.1} parent=5 // pred_check
      %p175 = pneg %p174
    $region30: #{lstm2_forward.1} parent=5 // pred_check_branch
      %177 = sbr.rel (%p175) target = $region32
    $region31: #{lstm2_forward.1} parent=5 // pred_region
      // Predicated region
      $region33: #{lstm2_forward.1} parent=31 // pred_check
        %p178 = pneg %p31
      $region34: #{lstm2_forward.1} parent=31 // pred_check_branch
        %180 = sbr.rel (%p178) target = $region36
      $region35: #{lstm2_forward.1} parent=31 // pred_region
        %s181 = smul.u32 4, %s11
        %p182 = scmp.lt.s32.totalorder %s181, 7
        %s183 = scalar_select %p182, %s181, 7
        %s184 = smul.addr %s183, 4
        %s185 = scalar_lea.vmem %s0, %s184
        %s186 = smul.u32 4, %s11
      $region36: #{lstm2_forward.1} parent=31 // pred_fallthru
        _
    $region32: #{lstm2_forward.1} parent=5 // pred_fallthru
      _
    %p187 = scmp.le.s32.totalorder 1, %s11
    %p188 = scmp.lt.s32.totalorder %s11, 3
    %p189 = pnand %p187, %p188
    %p190 = pneg %p189
    // Predicated region
    $region37: #{lstm2_forward.1} parent=5 // pred_check
      _
    $region38: #{lstm2_forward.1} parent=5 // pred_check_branch
      %192 = sbr.rel (%p189) target = $region40
    $region39: #{lstm2_forward.1} parent=5 // pred_region
      %s193 = ssub.s32 %s11, 1
      %s194 = smul.u32 4, %s16
      %p195 = scmp.lt.s32.totalorder %s194, 7
      %s196 = scalar_select %p195, %s194, 7
      %s197 = smul.addr %s196, 4
      %s198 = scalar_lea.vmem %s0, %s197
      %p199 = pneg %p37
      %p200 = pneg %p34
      %p201 = pneg %p58
      %p202 = pneg %p55
      %p203 = pneg %p79
      %p204 = pneg %p76
      %p205 = pneg %p100
      %p206 = pneg %p97
      %p207 = pneg %p121
      %p208 = pneg %p118
      %p209 = pneg %p147
      %p210 = pneg %p144
      %p211 = scmp.lt.s32.totalorder %s16, 1
      %s212 = scalar_select %p211, %s16, 1
      %s213 = smul.addr %s212, 8
      %s214 = scalar_lea.vmem %s5, %s213
      %s215 = smul.u32 4, %s16
      %p216 = scmp.lt.s32.totalorder %s215, 7
      %s217 = scalar_select %p216, %s215, 7
      %s218 = smul.addr %s217, 4
      %s219 = scalar_lea.vmem %s0, %s218
      %s220 = smul.u32 4, %s16
      %p221 = scmp.lt.s32.totalorder %s16, 1
      %s222 = scalar_select %p221, %s16, 1
      %s223 = smul.addr %s222, 8
      %s224 = scalar_lea.vmem %s5, %s223
      %p226 = scmp.eq.s32.totalorder %s16, 0
      // Predicated region
      $region41: #{lstm2_forward.1} parent=39 // pred_check
        %p227 = pneg %p226
      $region42: #{lstm2_forward.1} parent=39 // pred_check_branch
        %229 = sbr.rel (%p227) target = $region44
      $region43: #{lstm2_forward.1} parent=39 // pred_region
        %230 = vst [vmem:[#allocation2] sm:$0xff] 0.0
        %231 = vst [vmem:[#allocation3] sm:$0xff] 0.0
      $region44: #{lstm2_forward.1} parent=39 // pred_fallthru
        _
      %v232 = vld [vmem:[%s1] sm:$0xf]
      %v233 = vld [vmem:[%s1 + $0x4] sm:$0xf]
      %v234 = vld [vmem:[%s3] sm:$0xff]
      %v235 = vld [vmem:[%s3 + $0x8] sm:$0xff]
      %v236 = vld [vmem:[%s3 + $0x10] sm:$0xff]
      %v237 = vld [vmem:[%s3 + $0x18] sm:$0xff]
      %v238 = vld [vmem:[%s3 + $0x20] sm:$0xff]
      %v239 = vld [vmem:[%s3 + $0x28] sm:$0xff]
      %v240 = vld [vmem:[%s3 + $0x30] sm:$0xff]
      %v241 = vld [vmem:[%s3 + $0x38] sm:$0xff]
      %v242 = vld [vmem:[%s4] sm:$0x1]
      %v244 = vlaneseq
      %v245 = vshrl.u32 %v244, 7
      %v246 = vsub.s32 0, %v245
      %v247 = vrot.slane %v242, %v246
      %v249 = vld [vmem:[%s219] sm:$0xf]
      %v250 = vld [vmem:[%s219 + $0x4] sm:$0xf]
      %v251 = vld [vmem:[%s219 + $0x8] sm:$0xf]
      %v252 = vld [vmem:[%s219 + $0xc] sm:$0xf]
      %v253 = vld [vmem:[%s2] sm:$0x1]
      %v255 = vlaneseq
      %v256 = vshrl.u32 %v255, 7
      %v257 = vsub.s32 0, %v256
      %v258 = vrot.slane %v253, %v257
      %v264 = vunpack.c.l.b16 %v249
      %v265 = vunpack.c.l.b16 %v250
      %v266 = vunpack.c.l.b16 %v251
      %v267 = vunpack.c.l.b16 %v252
      %v268 = vpack.c.b16 %v265, %v264
      %v269 = vpack.c.b16 %v267, %v266
      %v272 = vunpack.c.l.b16 %v232
      %v273 = vunpack.c.l.b16 %v233
      %v274 = vpack.c.b16 %v273, %v272
      %vm276 = vcmask 130048
      %v278 = vsel %vm276, %v268, 0
      %v281 = vsel %vm276, %v269, 0
      %283 = vmatprep.subr.bf16.mxu0 0
      %284 = vmatpush1.bf16.msra.mxu0 0
      %285 = vmatprep.subr.bf16.mxu0 0
      %286 = vmatpush1.bf16.msra.mxu0 0
      %287 = vmatprep.subr.bf16.mxu0 0
      %288 = vmatpush1.bf16.msra.mxu0 0
      %289 = vmatprep.subr.bf16.mxu0 0
      %290 = vmatpush1.bf16.msra.mxu0 0
      %291 = vmatprep.subr.bf16.mxu0 0
      %292 = vmatpush1.bf16.msra.mxu0 0
      %293 = vmatprep.subr.bf16.mxu0 0
      %294 = vmatpush1.bf16.msra.mxu0 0
      %295 = vmatprep.subr.bf16.mxu0 0
      %296 = vmatpush1.bf16.msra.mxu0 0
      %297 = vmatprep.subr.bf16.mxu0 0
      %298 = vmatpush1.bf16.msra.mxu0 %v274
      %299 = vmatprep.subr.bf16.mxu0 0
      %300 = vmatpush2.bf16.msra.mxu0 0
      %301 = vmatprep.subr.bf16.mxu0 0
      %302 = vmatpush2.bf16.msra.mxu0 0
      %303 = vmatprep.subr.bf16.mxu0 0
      %304 = vmatpush2.bf16.msra.mxu0 0
      %305 = vmatprep.subr.bf16.mxu0 0
      %306 = vmatpush2.bf16.msra.mxu0 0
      %307 = vmatprep.subr.bf16.mxu0 0
      %308 = vmatpush2.bf16.msra.mxu0 0
      %309 = vmatprep.subr.bf16.mxu0 0
      %310 = vmatpush2.bf16.msra.mxu0 0
      %311 = vmatprep.subr.bf16.mxu0 0
      %312 = vmatpush2.bf16.msra.mxu0 0
      %313 = vmatprep.subr.bf16.mxu0 0
      %314 = vmatpush2.bf16.msra.mxu0 0
      %315 = vmatprep.mubr.bf16.mxu0 0
      %316 = vmatmul.mubr.bf16.gmra.mxu0 %v278
      %v317 = vpop.f32.mrf.mxu0
      %v318 = vadd.f32 %v258, %v317
      %v319 = vpop.f32.mrf.mxu0
      %v320 = vpop.f32.mrf.mxu0
      %v321 = vadd.f32 %v258, %v320
      %v322 = vpop.f32.mrf.mxu0
      %323 = vmatprep.mubr.bf16.mxu0 0
      %324 = vmatmul.mubr.bf16.gmra.mxu0 %v281
      %v325 = vpop.f32.mrf.mxu0
      %v326 = vadd.f32 %v258, %v325
      %v327 = vpop.f32.mrf.mxu0
      %v328 = vpop.f32.mrf.mxu0
      %v329 = vadd.f32 %v258, %v328
      %v330 = vpop.f32.mrf.mxu0
      %331 = vdwg.mxu0
      %332 = vst [vmem:[#allocation4] sm:$0xff] %v318
      %333 = vst [vmem:[#allocation4 + $0x8] sm:$0xff] %v321
      %334 = vst [vmem:[#allocation4 + $0x10] sm:$0xff] %v326
      %335 = vst [vmem:[#allocation4 + $0x18] sm:$0xff] %v329
      %v336 = vld [vmem:[#allocation2] sm:$0xff]
      %v337 = vld [vmem:[#allocation3] sm:$0xff]
      %v338 = vld [vmem:[#allocation4] sm:$0xff]
      %v339 = vadd.f32 %v338, %v337
      %v340 = vmul.f32 %v339, 0.5
      %v341 = vtanh.pop %v340
      %v342 = vmul.f32 %v341, 0.5
      %v343 = vadd.f32 %v342, 0.5
      %v344 = vtanh.pop %v339
      %v345 = vmul.f32 %v343, %v336
      %347 = vrot.lane.b32.xlu0 %v344, 64
      %v348 = vpop.permute.xlu0 %347
      %v350 = vmul.f32 %v343, %v348
      %352 = vrot.lane.b32.xlu0 %v350, 32
      %v353 = vpop.permute.xlu0 %352
      %v355 = vadd.f32 %v345, %v353
      %v356 = vtanh.pop %v355
      %358 = vrot.lane.b32.xlu0 %v356, 64
      %v359 = vpop.permute.xlu0 %358
      %v361 = vmul.f32 %v343, %v359
      %363 = vrot.lane.b32.xlu0 %v361, 32
      %v364 = vpop.permute.xlu0 %363
      %367 = vrot.lane.b32.xlu0 %v336, 96
      %v368 = vpop.permute.xlu0 %367
      %vm370 = vcmask 261120
      %v371 = vsel %vm370, %v364, %v368
      %v372 = vpack.c.bf16 %v371, %v371
      %v381 = vunpack.c.l.b16 %v234
      %v382 = vunpack.c.h.b16 %v234
      %v383 = vunpack.c.l.b16 %v235
      %v384 = vunpack.c.h.b16 %v235
      %v385 = vunpack.c.l.b16 %v236
      %v386 = vunpack.c.h.b16 %v236
      %v387 = vunpack.c.l.b16 %v237
      %v388 = vunpack.c.h.b16 %v237
      %v389 = vunpack.c.l.b16 %v238
      %v390 = vunpack.c.h.b16 %v238
      %v391 = vunpack.c.l.b16 %v239
      %v392 = vunpack.c.h.b16 %v239
      %v393 = vunpack.c.l.b16 %v240
      %v394 = vunpack.c.h.b16 %v240
      %v395 = vunpack.c.l.b16 %v241
      %v396 = vunpack.c.h.b16 %v241
      %v397 = vpack.c.b16 %v383, %v381
      %v398 = vpack.c.b16 %v384, %v382
      %v399 = vpack.c.b16 %v387, %v385
      %v400 = vpack.c.b16 %v388, %v386
      %v401 = vpack.c.b16 %v391, %v389
      %v402 = vpack.c.b16 %v392, %v390
      %v403 = vpack.c.b16 %v395, %v393
      %v404 = vpack.c.b16 %v396, %v394
      %vm413 = vcmask 523264
      %v415 = vsel %vm413, %v372, 0
      %417 = vmatprep.subr.bf16.mxu0 0
      %418 = vmatpush1.bf16.msra.mxu0 0
      %419 = vmatprep.subr.bf16.mxu0 0
      %420 = vmatpush1.bf16.msra.mxu0 0
      %421 = vmatprep.subr.bf16.mxu0 0
      %422 = vmatpush1.bf16.msra.mxu0 0
      %423 = vmatprep.subr.bf16.mxu0 0
      %424 = vmatpush1.bf16.msra.mxu0 0
      %425 = vmatprep.subr.bf16.mxu0 %v404
      %426 = vmatpush1.bf16.msra.mxu0 %v403
      %427 = vmatprep.subr.bf16.mxu0 %v402
      %428 = vmatpush1.bf16.msra.mxu0 %v401
      %429 = vmatprep.subr.bf16.mxu0 %v400
      %430 = vmatpush1.bf16.msra.mxu0 %v399
      %431 = vmatprep.subr.bf16.mxu0 %v398
      %432 = vmatpush1.bf16.msra.mxu0 %v397
      %433 = vmatprep.subr.bf16.mxu0 0
      %434 = vmatpush2.bf16.msra.mxu0 0
      %435 = vmatprep.subr.bf16.mxu0 0
      %436 = vmatpush2.bf16.msra.mxu0 0
      %437 = vmatprep.subr.bf16.mxu0 0
      %438 = vmatpush2.bf16.msra.mxu0 0
      %439 = vmatprep.subr.bf16.mxu0 0
      %440 = vmatpush2.bf16.msra.mxu0 0
      %441 = vmatprep.subr.bf16.mxu0 0
      %442 = vmatpush2.bf16.msra.mxu0 0
      %443 = vmatprep.subr.bf16.mxu0 0
      %444 = vmatpush2.bf16.msra.mxu0 0
      %445 = vmatprep.subr.bf16.mxu0 0
      %446 = vmatpush2.bf16.msra.mxu0 0
      %447 = vmatprep.subr.bf16.mxu0 0
      %448 = vmatpush2.bf16.msra.mxu0 0
      %449 = vmatprep.mubr.bf16.mxu0 0
      %450 = vmatmul.mubr.bf16.gmra.mxu0 %v415
      %v451 = vpop.f32.mrf.mxu0
      %v452 = vadd.f32 0.0, %v451
      %v453 = vpop.f32.mrf.mxu0
      %v454 = vadd.f32 0.0, %v453
      %v455 = vpop.f32.mrf.mxu0
      %v456 = vpop.f32.mrf.mxu0
      %457 = vdwg.mxu0
      %v458 = vadd.f32 %v454, %v247
      %v459 = vmul.f32 %v458, 0.5
      %v460 = vtanh.pop %v459
      %v461 = vmul.f32 %v460, 0.5
      %v462 = vadd.f32 %v461, 0.5
      %v463 = vtanh.pop %v458
      %464 = vrot.lane.b32.xlu0 %v336, 64
      %v465 = vpop.permute.xlu0 %464
      %v467 = vmul.f32 %v462, %v465
      %469 = vrot.lane.b32.xlu0 %v463, 64
      %v470 = vpop.permute.xlu0 %469
      %v472 = vmul.f32 %v462, %v470
      %474 = vrot.lane.b32.xlu0 %v472, 32
      %v475 = vpop.permute.xlu0 %474
      %v477 = vadd.f32 %v467, %v475
      %v478 = vtanh.pop %v477
      %480 = vrot.lane.b32.xlu0 %v478, 64
      %v481 = vpop.permute.xlu0 %480
      %v483 = vmul.f32 %v462, %v481
      %s484 = scalar_lea.vmem [#allocation4], 8
      %v485 = vld [vmem:[%s484] sm:$0xff]
      %v486 = vadd.f32 %v485, %v452
      %v487 = vmul.f32 %v486, 0.5
      %v488 = vtanh.pop %v487
      %v489 = vmul.f32 %v488, 0.5
      %v490 = vadd.f32 %v489, 0.5
      %v491 = vtanh.pop %v486
      %v492 = vmul.f32 %v490, %v355
      %494 = vrot.lane.b32.xlu0 %v491, 64
      %v495 = vpop.permute.xlu0 %494
      %v497 = vmul.f32 %v490, %v495
      %499 = vrot.lane.b32.xlu0 %v497, 32
      %v500 = vpop.permute.xlu0 %499
      %v502 = vadd.f32 %v492, %v500
      %v503 = vtanh.pop %v502
      %505 = vrot.lane.b32.xlu0 %v503, 64
      %v506 = vpop.permute.xlu0 %505
      %v508 = vmul.f32 %v490, %v506
      %510 = vrot.lane.b32.xlu0 %v508, 32
      %v511 = vpop.permute.xlu0 %510
      %514 = vrot.lane.b32.xlu0 %v483, 64
      %v515 = vpop.permute.xlu0 %514
      %v517 = vsel %vm370, %v511, %v515
      %v518 = vpack.c.bf16 %v517, %v517
      %v520 = vsel %vm413, %v518, 0
      %522 = vmatprep.subr.bf16.mxu0 0
      %523 = vmatpush1.bf16.msra.mxu0 0
      %524 = vmatprep.subr.bf16.mxu0 0
      %525 = vmatpush1.bf16.msra.mxu0 0
      %526 = vmatprep.subr.bf16.mxu0 0
      %527 = vmatpush1.bf16.msra.mxu0 0
      %528 = vmatprep.subr.bf16.mxu0 0
      %529 = vmatpush1.bf16.msra.mxu0 0
      %530 = vmatprep.subr.bf16.mxu0 %v404
      %531 = vmatpush1.bf16.msra.mxu0 %v403
      %532 = vmatprep.subr.bf16.mxu0 %v402
      %533 = vmatpush1.bf16.msra.mxu0 %v401
      %534 = vmatprep.subr.bf16.mxu0 %v400
      %535 = vmatpush1.bf16.msra.mxu0 %v399
      %536 = vmatprep.subr.bf16.mxu0 %v398
      %537 = vmatpush1.bf16.msra.mxu0 %v397
      %538 = vmatprep.subr.bf16.mxu0 0
      %539 = vmatpush2.bf16.msra.mxu0 0
      %540 = vmatprep.subr.bf16.mxu0 0
      %541 = vmatpush2.bf16.msra.mxu0 0
      %542 = vmatprep.subr.bf16.mxu0 0
      %543 = vmatpush2.bf16.msra.mxu0 0
      %544 = vmatprep.subr.bf16.mxu0 0
      %545 = vmatpush2.bf16.msra.mxu0 0
      %546 = vmatprep.subr.bf16.mxu0 0
      %547 = vmatpush2.bf16.msra.mxu0 0
      %548 = vmatprep.subr.bf16.mxu0 0
      %549 = vmatpush2.bf16.msra.mxu0 0
      %550 = vmatprep.subr.bf16.mxu0 0
      %551 = vmatpush2.bf16.msra.mxu0 0
      %552 = vmatprep.subr.bf16.mxu0 0
      %553 = vmatpush2.bf16.msra.mxu0 0
      %554 = vmatprep.mubr.bf16.mxu0 0
      %555 = vmatmul.mubr.bf16.gmra.mxu0 %v520
      %v556 = vpop.f32.mrf.mxu0
      %v557 = vadd.f32 0.0, %v556
      %v558 = vpop.f32.mrf.mxu0
      %v559 = vadd.f32 0.0, %v558
      %v560 = vpop.f32.mrf.mxu0
      %v561 = vpop.f32.mrf.mxu0
      %562 = vdwg.mxu0
      %v563 = vadd.f32 %v559, %v247
      %v564 = vmul.f32 %v563, 0.5
      %v565 = vtanh.pop %v564
      %v566 = vmul.f32 %v565, 0.5
      %v567 = vadd.f32 %v566, 0.5
      %v568 = vtanh.pop %v563
      %v569 = vmul.f32 %v567, %v477
      %571 = vrot.lane.b32.xlu0 %v568, 64
      %v572 = vpop.permute.xlu0 %571
      %v574 = vmul.f32 %v567, %v572
      %576 = vrot.lane.b32.xlu0 %v574, 32
      %v577 = vpop.permute.xlu0 %576
      %v579 = vadd.f32 %v569, %v577
      %v580 = vtanh.pop %v579
      %582 = vrot.lane.b32.xlu0 %v580, 64
      %v583 = vpop.permute.xlu0 %582
      %v585 = vmul.f32 %v567, %v583
      %s586 = scalar_lea.vmem [#allocation4], 16
      %v587 = vld [vmem:[%s586] sm:$0xff]
      %v588 = vadd.f32 %v587, %v557
      %v589 = vmul.f32 %v588, 0.5
      %v590 = vtanh.pop %v589
      %v591 = vmul.f32 %v590, 0.5
      %v592 = vadd.f32 %v591, 0.5
      %v593 = vtanh.pop %v588
      %v594 = vmul.f32 %v592, %v502
      %596 = vrot.lane.b32.xlu0 %v593, 64
      %v597 = vpop.permute.xlu0 %596
      %v599 = vmul.f32 %v592, %v597
      %601 = vrot.lane.b32.xlu0 %v599, 32
      %v602 = vpop.permute.xlu0 %601
      %v604 = vadd.f32 %v594, %v602
      %v605 = vtanh.pop %v604
      %607 = vrot.lane.b32.xlu0 %v605, 64
      %v608 = vpop.permute.xlu0 %607
      %v610 = vmul.f32 %v592, %v608
      %612 = vrot.lane.b32.xlu0 %v610, 32
      %v613 = vpop.permute.xlu0 %612
      %616 = vrot.lane.b32.xlu0 %v585, 64
      %v617 = vpop.permute.xlu0 %616
      %v619 = vsel %vm370, %v613, %v617
      %v620 = vpack.c.bf16 %v619, %v619
      %v622 = vsel %vm413, %v620, 0
      %624 = vmatprep.subr.bf16.mxu0 0
      %625 = vmatpush1.bf16.msra.mxu0 0
      %626 = vmatprep.subr.bf16.mxu0 0
      %627 = vmatpush1.bf16.msra.mxu0 0
      %628 = vmatprep.subr.bf16.mxu0 0
      %629 = vmatpush1.bf16.msra.mxu0 0
      %630 = vmatprep.subr.bf16.mxu0 0
      %631 = vmatpush1.bf16.msra.mxu0 0
      %632 = vmatprep.subr.bf16.mxu0 %v404
      %633 = vmatpush1.bf16.msra.mxu0 %v403
      %634 = vmatprep.subr.bf16.mxu0 %v402
      %635 = vmatpush1.bf16.msra.mxu0 %v401
      %636 = vmatprep.subr.bf16.mxu0 %v400
      %637 = vmatpush1.bf16.msra.mxu0 %v399
      %638 = vmatprep.subr.bf16.mxu0 %v398
      %639 = vmatpush1.bf16.msra.mxu0 %v397
      %640 = vmatprep.subr.bf16.mxu0 0
      %641 = vmatpush2.bf16.msra.mxu0 0
      %642 = vmatprep.subr.bf16.mxu0 0
      %643 = vmatpush2.bf16.msra.mxu0 0
      %644 = vmatprep.subr.bf16.mxu0 0
      %645 = vmatpush2.bf16.msra.mxu0 0
      %646 = vmatprep.subr.bf16.mxu0 0
      %647 = vmatpush2.bf16.msra.mxu0 0
      %648 = vmatprep.subr.bf16.mxu0 0
      %649 = vmatpush2.bf16.msra.mxu0 0
      %650 = vmatprep.subr.bf16.mxu0 0
      %651 = vmatpush2.bf16.msra.mxu0 0
      %652 = vmatprep.subr.bf16.mxu0 0
      %653 = vmatpush2.bf16.msra.mxu0 0
      %654 = vmatprep.subr.bf16.mxu0 0
      %655 = vmatpush2.bf16.msra.mxu0 0
      %656 = vmatprep.mubr.bf16.mxu0 0
      %657 = vmatmul.mubr.bf16.gmra.mxu0 %v622
      %v658 = vpop.f32.mrf.mxu0
      %v659 = vadd.f32 0.0, %v658
      %v660 = vpop.f32.mrf.mxu0
      %v661 = vadd.f32 0.0, %v660
      %v662 = vpop.f32.mrf.mxu0
      %v663 = vpop.f32.mrf.mxu0
      %664 = vdwg.mxu0
      %v665 = vadd.f32 %v661, %v247
      %v666 = vmul.f32 %v665, 0.5
      %v667 = vtanh.pop %v666
      %v668 = vmul.f32 %v667, 0.5
      %v669 = vadd.f32 %v668, 0.5
      %v670 = vtanh.pop %v665
      %v671 = vmul.f32 %v669, %v579
      %673 = vrot.lane.b32.xlu0 %v670, 64
      %v674 = vpop.permute.xlu0 %673
      %v676 = vmul.f32 %v669, %v674
      %678 = vrot.lane.b32.xlu0 %v676, 32
      %v679 = vpop.permute.xlu0 %678
      %v681 = vadd.f32 %v671, %v679
      %v682 = vtanh.pop %v681
      %684 = vrot.lane.b32.xlu0 %v682, 64
      %v685 = vpop.permute.xlu0 %684
      %v687 = vmul.f32 %v669, %v685
      %s688 = scalar_lea.vmem [#allocation4], 24
      %v689 = vld [vmem:[%s688] sm:$0xff]
      %v690 = vadd.f32 %v689, %v659
      %v691 = vmul.f32 %v690, 0.5
      %v692 = vtanh.pop %v691
      %v693 = vmul.f32 %v692, 0.5
      %v694 = vadd.f32 %v693, 0.5
      %v695 = vtanh.pop %v690
      %v696 = vmul.f32 %v694, %v604
      %698 = vrot.lane.b32.xlu0 %v695, 64
      %v699 = vpop.permute.xlu0 %698
      %v701 = vmul.f32 %v694, %v699
      %703 = vrot.lane.b32.xlu0 %v701, 32
      %v704 = vpop.permute.xlu0 %703
      %v706 = vadd.f32 %v696, %v704
      %v707 = vtanh.pop %v706
      %709 = vrot.lane.b32.xlu0 %v707, 64
      %v710 = vpop.permute.xlu0 %709
      %v712 = vmul.f32 %v694, %v710
      %714 = vrot.lane.b32.xlu0 %v712, 32
      %v715 = vpop.permute.xlu0 %714
      %718 = vrot.lane.b32.xlu0 %v687, 64
      %v719 = vpop.permute.xlu0 %718
      %v721 = vsel %vm370, %v715, %v719
      %v722 = vpack.c.bf16 %v721, %v721
      %v724 = vsel %vm413, %v722, 0
      %726 = vmatprep.subr.bf16.mxu0 0
      %727 = vmatpush1.bf16.msra.mxu0 0
      %728 = vmatprep.subr.bf16.mxu0 0
      %729 = vmatpush1.bf16.msra.mxu0 0
      %730 = vmatprep.subr.bf16.mxu0 0
      %731 = vmatpush1.bf16.msra.mxu0 0
      %732 = vmatprep.subr.bf16.mxu0 0
      %733 = vmatpush1.bf16.msra.mxu0 0
      %734 = vmatprep.subr.bf16.mxu0 %v404
      %735 = vmatpush1.bf16.msra.mxu0 %v403
      %736 = vmatprep.subr.bf16.mxu0 %v402
      %737 = vmatpush1.bf16.msra.mxu0 %v401
      %738 = vmatprep.subr.bf16.mxu0 %v400
      %739 = vmatpush1.bf16.msra.mxu0 %v399
      %740 = vmatprep.subr.bf16.mxu0 %v398
      %741 = vmatpush1.bf16.msra.mxu0 %v397
      %742 = vmatprep.subr.bf16.mxu0 0
      %743 = vmatpush2.bf16.msra.mxu0 0
      %744 = vmatprep.subr.bf16.mxu0 0
      %745 = vmatpush2.bf16.msra.mxu0 0
      %746 = vmatprep.subr.bf16.mxu0 0
      %747 = vmatpush2.bf16.msra.mxu0 0
      %748 = vmatprep.subr.bf16.mxu0 0
      %749 = vmatpush2.bf16.msra.mxu0 0
      %750 = vmatprep.subr.bf16.mxu0 0
      %751 = vmatpush2.bf16.msra.mxu0 0
      %752 = vmatprep.subr.bf16.mxu0 0
      %753 = vmatpush2.bf16.msra.mxu0 0
      %754 = vmatprep.subr.bf16.mxu0 0
      %755 = vmatpush2.bf16.msra.mxu0 0
      %756 = vmatprep.subr.bf16.mxu0 0
      %757 = vmatpush2.bf16.msra.mxu0 0
      %758 = vmatprep.mubr.bf16.mxu0 0
      %759 = vmatmul.mubr.bf16.gmra.mxu0 %v724
      %v760 = vpop.f32.mrf.mxu0
      %v761 = vadd.f32 0.0, %v760
      %v762 = vpop.f32.mrf.mxu0
      %v763 = vadd.f32 0.0, %v762
      %v764 = vpop.f32.mrf.mxu0
      %v765 = vpop.f32.mrf.mxu0
      %766 = vdwg.mxu0
      %v767 = vadd.f32 %v763, %v247
      %v768 = vmul.f32 %v767, 0.5
      %v769 = vtanh.pop %v768
      %v770 = vmul.f32 %v769, 0.5
      %v771 = vadd.f32 %v770, 0.5
      %v772 = vtanh.pop %v767
      %v773 = vmul.f32 %v771, %v681
      %775 = vrot.lane.b32.xlu0 %v772, 64
      %v776 = vpop.permute.xlu0 %775
      %v778 = vmul.f32 %v771, %v776
      %780 = vrot.lane.b32.xlu0 %v778, 32
      %v781 = vpop.permute.xlu0 %780
      %v783 = vadd.f32 %v773, %v781
      %v784 = vtanh.pop %v783
      %786 = vrot.lane.b32.xlu0 %v784, 64
      %v787 = vpop.permute.xlu0 %786
      %v789 = vmul.f32 %v771, %v787
      %790 = vrot.lane.b32.xlu0 %v483, 32
      %v791 = vpop.permute.xlu0 %790
      %793 = vrot.lane.b32.xlu0 %v687, 96
      %v794 = vpop.permute.xlu0 %793
      %v796 = vsel %vm370, %v791, %v617
      %v797 = vsel %vm413, %v796, %v794
      %vm798 = vcmask 785408
      %v799 = vsel %vm798, %v797, %v789
      %800 = vst [vmem:[%s224] sm:$0xff] %v799
      %802 = vrot.lane.b32.xlu0 %v789, 96
      %v803 = vpop.permute.xlu0 %802
      %806 = vrot.lane.b32.xlu0 %v783, 64
      %v807 = vpop.permute.xlu0 %806
      %v809 = vsel %vm370, %v715, %v706
      %v810 = vsel %vm413, %v809, %v803
      %v811 = vsel %vm798, %v810, %v807
      %812 = vst [vmem:[#allocation2] sm:$0xff] %v811
      %813 = vst [vmem:[#allocation3] sm:$0xff] %v761
      %p814 = scmp.lt.s32.totalorder %s16, 1
      %s815 = scalar_select %p814, %s16, 1
      %s816 = smul.addr %s815, 8
      %s817 = scalar_lea.vmem %s5, %s816
      // Predicated region
      $region45: #{lstm2_forward.1} parent=39 // pred_check
        %p818 = pneg %p144
      $region46: #{lstm2_forward.1} parent=39 // pred_check_branch
        %820 = sbr.rel (%p818) target = $region48
      $region47: #{lstm2_forward.1} parent=39 // pred_region
        _
      $region48: #{lstm2_forward.1} parent=39 // pred_fallthru
        _
    $region40: #{lstm2_forward.1} parent=5 // pred_fallthru
      _
    %p821 = scmp.le.s32.totalorder 2, %s11
    // Predicated region
    $region49: #{lstm2_forward.1} parent=5 // pred_check
      %p822 = pneg %p821
    $region50: #{lstm2_forward.1} parent=5 // pred_check_branch
      %824 = sbr.rel (%p822) target = $region52
    $region51: #{lstm2_forward.1} parent=5 // pred_region
      %s825 = ssub.s32 %s11, 2
      // Predicated region
      $region53: #{lstm2_forward.1} parent=51 // pred_check
        %p826 = pneg %p150
      $region54: #{lstm2_forward.1} parent=51 // pred_check_branch
        %828 = sbr.rel (%p826) target = $region56
      $region55: #{lstm2_forward.1} parent=51 // pred_region
        %p829 = scmp.lt.s32.totalorder %s17, 1
        %s830 = scalar_select %p829, %s17, 1
        %s831 = smul.addr %s830, 8
        %s832 = scalar_lea.vmem %s5, %s831
      $region56: #{lstm2_forward.1} parent=51 // pred_fallthru
        _
    $region52: #{lstm2_forward.1} parent=5 // pred_fallthru
      _
  $region6: #{lstm2_forward.1} parent=0 // loop_footer
    %s15 = sadd.s32 1, %s11
  $region7: #{lstm2_forward.1} parent=0 // loop_footer_branch
    %10 = sbr.rel target = $region3
  $region8: #{lstm2_forward.1} parent=0 // loop_exit
    _

</llo_original>
